<compile_context>
chip_gen: v7x
topology: tpu7x:2x2x1
jax: 0.10.0
libtpu: 0.0.40
codegen_flags: <defaults>
</compile_context>

<pallas_src>
import functools

import jax
import jax.numpy as jnp
from jax.experimental import pallas as pl
from jax.experimental.pallas import tpu as pltpu

_LANE = 128
_VMEM_BUDGET = 36 * 1024 * 1024   # blocks (double-buffered) + temporaries
_VMEM_LIMIT = 48 * 1024 * 1024    # scoped limit: safe on v7x (64 MiB physical)
_MAX_ROW_TILE = 1024
_TEMP_SLABS = 8                   # conservative live f32 (row_tile,128) temps


def _apply_gamma(one_minus, gamma):
    g = float(gamma)
    if g.is_integer() and g >= 0:
        gi = int(g)
        if gi == 0:
            return jnp.ones_like(one_minus)
        w = one_minus
        for _ in range(gi - 1):
            w = w * one_minus
        return w
    # Non-integer gamma: clamp to avoid pow(negative, float) -> NaN (reachable
    # only via the +eps corner where p_t can slightly exceed 1).  Intentional
    # deviation from torch.pow which would return NaN there.
    return jnp.power(jnp.maximum(one_minus, 0.0), g)


def _focal_kernel(logits_ref, target_ref, out_ref, *, alpha, gamma, eps,
                  hw, row_tile, reduce_in_kernel):
    # logits_ref: (C, row_tile, 128) logits tile (any float dtype)
    # target_ref: (row_tile, 128) int32 class ids
    # out_ref:    (row_tile, 128) f32 per-pixel loss      (reduction='none')
    #             (1, 128)        f32 per-batch partials  (reduction='mean'/'sum')
    C = logits_ref.shape[0]
    t = target_ref[...]

    # Pass 1: per-pixel running max over classes.  Unrolled VALU max with only
    # a couple of (row_tile, 128) slabs live -- no (C, R, 128) temporaries.
    m = logits_ref[0].astype(jnp.float32)
    for c in range(1, C):
        m = jnp.maximum(m, logits_ref[c].astype(jnp.float32))

    # Pass 2: exp, denominator, and target-class numerator in one sweep.
    denom = jnp.zeros_like(m)
    e_t = jnp.zeros_like(m)
    for c in range(C):
        e_c = jnp.exp(logits_ref[c].astype(jnp.float32) - m)
        denom = denom + e_c
        e_t = e_t + jnp.where(t == c, e_c, 0.0)

    # p_t matches kornia: softmax(x)[target] + eps
    p_t = e_t / denom + eps
    w = _apply_gamma(1.0 - p_t, gamma)
    loss = (-alpha) * w * jnp.log(p_t)

    if reduce_in_kernel:
        # Mask pixels past the true spatial extent (ragged lane tail and any
        # out-of-bounds rows of a partial trailing block), then fold into the
        # per-batch (1, 128) accumulator that stays VMEM-resident across the
        # spatial grid axis.
        rows_i = jax.lax.broadcasted_iota(jnp.int32, loss.shape, 0)
        lanes_i = jax.lax.broadcasted_iota(jnp.int32, loss.shape, 1)
        gidx = (pl.program_id(1) * row_tile + rows_i) * _LANE + lanes_i
        loss = jnp.where(gidx < hw, loss, 0.0)
        partial = jnp.sum(loss, axis=0, keepdims=True)       # (1, 128)

        @pl.when(pl.program_id(1) == 0)
        def _():
            out_ref[...] = jnp.zeros_like(out_ref)

        out_ref[...] += partial
    else:
        out_ref[...] = loss.astype(out_ref.dtype)


def _pick_row_tile(rows, n_batch, n_classes, in_bytes, out_block_bytes):
    # VMEM bytes consumed per 128-pixel row within one grid step.
    per_row = _LANE * (2 * n_classes * in_bytes   # logits block, double-buffered
                       + 2 * 4                    # int32 target, double-buffered
                       + out_block_bytes          # output block (0 for reductions)
                       + _TEMP_SLABS * 4)         # live f32 temporaries
    row_tile = max(8, min(_MAX_ROW_TILE, (_VMEM_BUDGET // per_row) // 8 * 8))

    # Keep >= ~8 total grid steps so v7x's two TensorCores both get work and
    # the double-buffered DMA pipeline fills.
    blocks_wanted = max(1, -(-8 // max(1, n_batch)))
    tile_for_blocks = -(-rows // blocks_wanted)          # ceil
    tile_for_blocks = -(-tile_for_blocks // 8) * 8       # round up to mult of 8
    row_tile = min(row_tile, max(8, tile_for_blocks))

    # Clamp to the array extent: blocks must be multiples of 8 in the sublane
    # dim or equal to the full dim.
    if rows <= 8:
        return rows
    return max(8, min(row_tile, (rows // 8) * 8))


def focal_loss_pallas(logits, target, *, alpha, gamma=2.0,
                      reduction="none", eps=1e-8):
    """logits: (N, C, *spatial) float; target: (N, *spatial) int in [0, C)."""
    if reduction not in ("none", "mean", "sum"):
        raise NotImplementedError(f"Invalid reduction mode: {reduction}")

    N, C = logits.shape[0], logits.shape[1]
    spatial = logits.shape[2:]
    HW = 1
    for s in spatial:
        HW *= int(s)

    rows = -(-HW // _LANE)
    hw128 = rows * _LANE
    in_bytes = jnp.dtype(logits.dtype).itemsize
    reduce_in_kernel = reduction in ("mean", "sum")

    out_block_bytes = 0 if reduce_in_kernel else 2 * 4
    row_tile = _pick_row_tile(rows, N, C, in_bytes, out_block_bytes)
    n_row_blocks = -(-rows // row_tile)

    # Flatten spatial -> lane-dense (rows, 128).  Only the ragged sub-128 tail
    # is padded (no padding at all when HW % 128 == 0); partial trailing row
    # blocks are handled by the grid + in-kernel masking.
    logits_flat = logits.reshape(N, C, HW)
    target_flat = target.astype(jnp.int32).reshape(N, HW)
    if hw128 != HW:
        pad = hw128 - HW
        logits_flat = jnp.pad(logits_flat, ((0, 0), (0, 0), (0, pad)))
        target_flat = jnp.pad(target_flat, ((0, 0), (0, pad)))
    logits_tiled = logits_flat.reshape(N, C, rows, _LANE)
    target_tiled = target_flat.reshape(N, rows, _LANE)

    kernel = functools.partial(
        _focal_kernel, alpha=float(alpha), gamma=float(gamma), eps=float(eps),
        hw=HW, row_tile=row_tile, reduce_in_kernel=reduce_in_kernel)

    in_specs = [
        pl.BlockSpec((pl.Squeezed(), C, row_tile, _LANE),
                     lambda n, r: (n, 0, r, 0)),
        pl.BlockSpec((pl.Squeezed(), row_tile, _LANE),
                     lambda n, r: (n, r, 0)),
    ]

    if reduce_in_kernel:
        out_shape = jax.ShapeDtypeStruct((N, 1, _LANE), jnp.float32)
        out_specs = pl.BlockSpec((pl.Squeezed(), 1, _LANE),
                                 lambda n, r: (n, 0, 0))
        semantics = ("parallel", "arbitrary")   # spatial axis accumulates
    else:
        out_shape = jax.ShapeDtypeStruct((N, rows, _LANE), jnp.float32)
        out_specs = pl.BlockSpec((pl.Squeezed(), row_tile, _LANE),
                                 lambda n, r: (n, r, 0))
        semantics = ("parallel", "parallel")

    out = pl.pallas_call(
        kernel,
        out_shape=out_shape,
        grid_spec=pltpu.PrefetchScalarGridSpec(
            num_scalar_prefetch=0,
            grid=(N, n_row_blocks),
            in_specs=in_specs,
            out_specs=out_specs,
        ),
        compiler_params=pltpu.CompilerParams(
            dimension_semantics=semantics,
            vmem_limit_bytes=_VMEM_LIMIT,
        ),
    )(logits_tiled, target_tiled)

    if reduction == "mean":
        return jnp.sum(out) / (N * HW)
    if reduction == "sum":
        return jnp.sum(out)

    # reduction == 'none' -- slice-back only needed when HW isn't lane-aligned.
    loss = out.reshape(N, hw128)
    if hw128 != HW:
        loss = loss[:, :HW]
    return loss.reshape((N,) + spatial)


def _focal_loss_ref(logits, target, *, alpha, gamma=2.0,
                    reduction="none", eps=1e-8):
    # Pure-JAX reference mirroring the PyTorch/kornia implementation.
    p = jax.nn.softmax(logits.astype(jnp.float32), axis=1) + eps
    one_hot = jax.nn.one_hot(target, logits.shape[1], axis=1, dtype=jnp.float32)
    weight = jnp.power(1.0 - p, gamma)
    focal = -alpha * weight * jnp.log(p)
    loss = jnp.sum(one_hot * focal, axis=1)
    if reduction == "none":
        return loss
    elif reduction == "mean":
        return jnp.mean(loss)
    elif reduction == "sum":
        return jnp.sum(loss)
    raise NotImplementedError(reduction)


if __name__ == "__main__":
    key = jax.random.PRNGKey(0)
    k1, k2, k3, k4, k5, k6 = jax.random.split(key, 6)
    alpha, gamma, eps = 0.5, 2.0, 1e-8

    # Case 1: lane-aligned spatial extent (HW = 256).
    N, C, H, W = 2, 4, 16, 16
    logits = jax.random.normal(k1, (N, C, H, W), dtype=jnp.float32)
    target = jax.random.randint(k2, (N, H, W), 0, C, dtype=jnp.int32)

    out_none = focal_loss_pallas(logits, target, alpha=alpha, gamma=gamma,
                                 reduction="none", eps=eps)
    jax.block_until_ready(out_none)
    ref_none = _focal_loss_ref(logits, target, alpha=alpha, gamma=gamma,
                               reduction="none", eps=eps)
    assert out_none.shape == (N, H, W)
    assert jnp.allclose(out_none, ref_none, atol=1e-5, rtol=1e-5)

    out_mean = focal_loss_pallas(logits, target, alpha=alpha, gamma=gamma,
                                 reduction="mean", eps=eps)
    jax.block_until_ready(out_mean)
    ref_mean = _focal_loss_ref(logits, target, alpha=alpha, gamma=gamma,
                               reduction="mean", eps=eps)
    assert jnp.allclose(out_mean, ref_mean, atol=1e-5, rtol=1e-5)

    out_sum = focal_loss_pallas(logits, target, alpha=alpha, gamma=gamma,
                                reduction="sum", eps=eps)
    jax.block_until_ready(out_sum)
    ref_sum = _focal_loss_ref(logits, target, alpha=alpha, gamma=gamma,
                              reduction="sum", eps=eps)
    assert jnp.allclose(out_sum, ref_sum, atol=1e-4, rtol=1e-5)

    # Case 2: ragged spatial extent (HW = 15), like the module docstring.
    N2, C2 = 1, 5
    logits2 = jax.random.normal(k3, (N2, C2, 3, 5), dtype=jnp.float32)
    target2 = jax.random.randint(k4, (N2, 3, 5), 0, C2, dtype=jnp.int32)
    out2n = focal_loss_pallas(logits2, target2, alpha=alpha, gamma=gamma,
                              reduction="none", eps=eps)
    jax.block_until_ready(out2n)
    ref2n = _focal_loss_ref(logits2, target2, alpha=alpha, gamma=gamma,
                            reduction="none", eps=eps)
    assert out2n.shape == (N2, 3, 5)
    assert jnp.allclose(out2n, ref2n, atol=1e-5, rtol=1e-5)
    out2m = focal_loss_pallas(logits2, target2, alpha=alpha, gamma=gamma,
                              reduction="mean", eps=eps)
    jax.block_until_ready(out2m)
    ref2m = _focal_loss_ref(logits2, target2, alpha=alpha, gamma=gamma,
                            reduction="mean", eps=eps)
    assert jnp.allclose(out2m, ref2m, atol=1e-5, rtol=1e-5)

    # Case 3: multi-block spatial grid with a partial trailing block
    # (HW = 2304 -> rows = 18, row_tile = 8, 3 spatial blocks).
    N3, C3, H3, W3 = 1, 3, 48, 48
    logits3 = jax.random.normal(k5, (N3, C3, H3, W3), dtype=jnp.float32)
    target3 = jax.random.randint(k6, (N3, H3, W3), 0, C3, dtype=jnp.int32)
    out3n = focal_loss_pallas(logits3, target3, alpha=alpha, gamma=gamma,
                              reduction="none", eps=eps)
    jax.block_until_ready(out3n)
    ref3n = _focal_loss_ref(logits3, target3, alpha=alpha, gamma=gamma,
                            reduction="none", eps=eps)
    assert jnp.allclose(out3n, ref3n, atol=1e-5, rtol=1e-5)
    out3m = focal_loss_pallas(logits3, target3, alpha=alpha, gamma=gamma,
                              reduction="mean", eps=eps)
    jax.block_until_ready(out3m)
    ref3m = _focal_loss_ref(logits3, target3, alpha=alpha, gamma=gamma,
                            reduction="mean", eps=eps)
    assert jnp.allclose(out3m, ref3m, atol=1e-5, rtol=1e-5)

    # NOTE: out-of-range targets (e.g. ignore_index = 255 / -100) give p_t = eps
    # and a large finite loss, whereas the one-hot reference contributes 0 for
    # such pixels -- mask them upstream if ignore_index semantics are needed.

    print("KERNEL_OK")
</pallas_src>

<mosaic_0001>
module attributes {stable_mosaic.version = 11 : i64} {
  func.func @_focal_kernel(%arg0: i32, %arg1: i32, %arg2: memref<1x4x2x128xf32, #tpu.memory_space<vmem>>, %arg3: memref<1x2x128xi32, #tpu.memory_space<vmem>>, %arg4: memref<1x2x128xf32, #tpu.memory_space<vmem>>) attributes {dimension_semantics = [#tpu.dimension_semantics<parallel>, #tpu.dimension_semantics<parallel>], iteration_bounds = array<i64: 2, 1>, scalar_prefetch = 0 : i64, scratch_operands = 0 : i64, tpu.core_type = #tpu.core_type<tc>, window_params = [{transform_indices = @transform_0, window_bounds = array<i64: 1, 4, 2, 128>}, {transform_indices = @transform_1, window_bounds = array<i64: 1, 2, 128>}, {transform_indices = @transform_2, window_bounds = array<i64: 1, 2, 128>}]} {
    %c0 = arith.constant 0 : index
    %c0_0 = arith.constant 0 : index
    %c0_1 = arith.constant 0 : index
    %0 = vector.load %arg3[%c0, %c0_0, %c0_1] : memref<1x2x128xi32, #tpu.memory_space<vmem>>, vector<1x2x128xi32>
    %1 = vector.shape_cast %0 : vector<1x2x128xi32> to vector<2x128xi32>
    %c0_2 = arith.constant 0 : index
    %c0_3 = arith.constant 0 : index
    %c0_4 = arith.constant 0 : index
    %c0_5 = arith.constant 0 : index
    %2 = vector.load %arg2[%c0_2, %c0_3, %c0_4, %c0_5] : memref<1x4x2x128xf32, #tpu.memory_space<vmem>>, vector<1x1x2x128xf32>
    %3 = vector.shape_cast %2 : vector<1x1x2x128xf32> to vector<2x128xf32>
    %c0_6 = arith.constant 0 : index
    %c1 = arith.constant 1 : index
    %c0_7 = arith.constant 0 : index
    %c0_8 = arith.constant 0 : index
    %4 = vector.load %arg2[%c0_6, %c1, %c0_7, %c0_8] : memref<1x4x2x128xf32, #tpu.memory_space<vmem>>, vector<1x1x2x128xf32>
    %5 = vector.shape_cast %4 : vector<1x1x2x128xf32> to vector<2x128xf32>
    %6 = arith.maximumf %3, %5 : vector<2x128xf32>
    %c0_9 = arith.constant 0 : index
    %c2 = arith.constant 2 : index
    %c0_10 = arith.constant 0 : index
    %c0_11 = arith.constant 0 : index
    %7 = vector.load %arg2[%c0_9, %c2, %c0_10, %c0_11] : memref<1x4x2x128xf32, #tpu.memory_space<vmem>>, vector<1x1x2x128xf32>
    %8 = vector.shape_cast %7 : vector<1x1x2x128xf32> to vector<2x128xf32>
    %9 = arith.maximumf %6, %8 : vector<2x128xf32>
    %c0_12 = arith.constant 0 : index
    %c3 = arith.constant 3 : index
    %c0_13 = arith.constant 0 : index
    %c0_14 = arith.constant 0 : index
    %10 = vector.load %arg2[%c0_12, %c3, %c0_13, %c0_14] : memref<1x4x2x128xf32, #tpu.memory_space<vmem>>, vector<1x1x2x128xf32>
    %11 = vector.shape_cast %10 : vector<1x1x2x128xf32> to vector<2x128xf32>
    %12 = arith.maximumf %9, %11 : vector<2x128xf32>
    %cst = arith.constant 0.000000e+00 : f32
    %13 = vector.broadcast %cst : f32 to vector<2x128xf32>
    %cst_15 = arith.constant 0.000000e+00 : f32
    %14 = vector.broadcast %cst_15 : f32 to vector<2x128xf32>
    %c0_16 = arith.constant 0 : index
    %c0_17 = arith.constant 0 : index
    %c0_18 = arith.constant 0 : index
    %c0_19 = arith.constant 0 : index
    %15 = vector.load %arg2[%c0_16, %c0_17, %c0_18, %c0_19] : memref<1x4x2x128xf32, #tpu.memory_space<vmem>>, vector<1x1x2x128xf32>
    %16 = vector.shape_cast %15 : vector<1x1x2x128xf32> to vector<2x128xf32>
    %17 = arith.subf %16, %12 : vector<2x128xf32>
    %18 = math.exp %17 : vector<2x128xf32>
    %19 = arith.addf %13, %18 : vector<2x128xf32>
    %c0_i32 = arith.constant 0 : i32
    %20 = vector.broadcast %c0_i32 : i32 to vector<2x128xi32>
    %21 = arith.cmpi eq, %1, %20 : vector<2x128xi32>
    %cst_20 = arith.constant 0.000000e+00 : f32
    %22 = vector.broadcast %cst_20 : f32 to vector<2x128xf32>
    %23 = arith.select %21, %18, %22 : vector<2x128xi1>, vector<2x128xf32>
    %24 = arith.addf %14, %23 : vector<2x128xf32>
    %c0_21 = arith.constant 0 : index
    %c1_22 = arith.constant 1 : index
    %c0_23 = arith.constant 0 : index
    %c0_24 = arith.constant 0 : index
    %25 = vector.load %arg2[%c0_21, %c1_22, %c0_23, %c0_24] : memref<1x4x2x128xf32, #tpu.memory_space<vmem>>, vector<1x1x2x128xf32>
    %26 = vector.shape_cast %25 : vector<1x1x2x128xf32> to vector<2x128xf32>
    %27 = arith.subf %26, %12 : vector<2x128xf32>
    %28 = math.exp %27 : vector<2x128xf32>
    %29 = arith.addf %19, %28 : vector<2x128xf32>
    %c1_i32 = arith.constant 1 : i32
    %30 = vector.broadcast %c1_i32 : i32 to vector<2x128xi32>
    %31 = arith.cmpi eq, %1, %30 : vector<2x128xi32>
    %cst_25 = arith.constant 0.000000e+00 : f32
    %32 = vector.broadcast %cst_25 : f32 to vector<2x128xf32>
    %33 = arith.select %31, %28, %32 : vector<2x128xi1>, vector<2x128xf32>
    %34 = arith.addf %24, %33 : vector<2x128xf32>
    %c0_26 = arith.constant 0 : index
    %c2_27 = arith.constant 2 : index
    %c0_28 = arith.constant 0 : index
    %c0_29 = arith.constant 0 : index
    %35 = vector.load %arg2[%c0_26, %c2_27, %c0_28, %c0_29] : memref<1x4x2x128xf32, #tpu.memory_space<vmem>>, vector<1x1x2x128xf32>
    %36 = vector.shape_cast %35 : vector<1x1x2x128xf32> to vector<2x128xf32>
    %37 = arith.subf %36, %12 : vector<2x128xf32>
    %38 = math.exp %37 : vector<2x128xf32>
    %39 = arith.addf %29, %38 : vector<2x128xf32>
    %c2_i32 = arith.constant 2 : i32
    %40 = vector.broadcast %c2_i32 : i32 to vector<2x128xi32>
    %41 = arith.cmpi eq, %1, %40 : vector<2x128xi32>
    %cst_30 = arith.constant 0.000000e+00 : f32
    %42 = vector.broadcast %cst_30 : f32 to vector<2x128xf32>
    %43 = arith.select %41, %38, %42 : vector<2x128xi1>, vector<2x128xf32>
    %44 = arith.addf %34, %43 : vector<2x128xf32>
    %c0_31 = arith.constant 0 : index
    %c3_32 = arith.constant 3 : index
    %c0_33 = arith.constant 0 : index
    %c0_34 = arith.constant 0 : index
    %45 = vector.load %arg2[%c0_31, %c3_32, %c0_33, %c0_34] : memref<1x4x2x128xf32, #tpu.memory_space<vmem>>, vector<1x1x2x128xf32>
    %46 = vector.shape_cast %45 : vector<1x1x2x128xf32> to vector<2x128xf32>
    %47 = arith.subf %46, %12 : vector<2x128xf32>
    %48 = math.exp %47 : vector<2x128xf32>
    %49 = arith.addf %39, %48 : vector<2x128xf32>
    %c3_i32 = arith.constant 3 : i32
    %50 = vector.broadcast %c3_i32 : i32 to vector<2x128xi32>
    %51 = arith.cmpi eq, %1, %50 : vector<2x128xi32>
    %cst_35 = arith.constant 0.000000e+00 : f32
    %52 = vector.broadcast %cst_35 : f32 to vector<2x128xf32>
    %53 = arith.select %51, %48, %52 : vector<2x128xi1>, vector<2x128xf32>
    %54 = arith.addf %44, %53 : vector<2x128xf32>
    %55 = arith.divf %54, %49 : vector<2x128xf32>
    %cst_36 = arith.constant 9.99999993E-9 : f32
    %56 = vector.broadcast %cst_36 : f32 to vector<2x128xf32>
    %57 = arith.addf %55, %56 : vector<2x128xf32>
    %cst_37 = arith.constant 1.000000e+00 : f32
    %58 = vector.broadcast %cst_37 : f32 to vector<2x128xf32>
    %59 = arith.subf %58, %57 : vector<2x128xf32>
    %60 = arith.mulf %59, %59 : vector<2x128xf32>
    %cst_38 = arith.constant -5.000000e-01 : f32
    %61 = vector.broadcast %cst_38 : f32 to vector<2x128xf32>
    %62 = arith.mulf %61, %60 : vector<2x128xf32>
    %63 = math.log %57 : vector<2x128xf32>
    %64 = arith.mulf %62, %63 : vector<2x128xf32>
    %c0_39 = arith.constant 0 : index
    %c0_40 = arith.constant 0 : index
    %c0_41 = arith.constant 0 : index
    %65 = vector.load %arg4[%c0_39, %c0_40, %c0_41] : memref<1x2x128xf32, #tpu.memory_space<vmem>>, vector<1x2x128xf32>
    %66 = vector.shape_cast %65 : vector<1x2x128xf32> to vector<2x128xf32>
    %67 = vector.shape_cast %64 : vector<2x128xf32> to vector<1x2x128xf32>
    tpu.vector_store %arg4[%c0_39, %c0_40, %c0_41], %67 {strides = array<i32>} : memref<1x2x128xf32, #tpu.memory_space<vmem>>, vector<1x2x128xf32>,
    return
  }
  func.func @transform_0(%arg0: i32, %arg1: i32) -> (i32, i32, i32, i32) {
    %c0_i32 = arith.constant 0 : i32
    %c0_i32_0 = arith.constant 0 : i32
    %c0_i32_1 = arith.constant 0 : i32
    return %arg0, %c0_i32, %arg1, %c0_i32_0 : i32, i32, i32, i32
  }
  func.func @transform_1(%arg0: i32, %arg1: i32) -> (i32, i32, i32) {
    %c0_i32 = arith.constant 0 : i32
    %c0_i32_0 = arith.constant 0 : i32
    return %arg0, %arg1, %c0_i32 : i32, i32, i32
  }
  func.func @transform_2(%arg0: i32, %arg1: i32) -> (i32, i32, i32) {
    %c0_i32 = arith.constant 0 : i32
    %c0_i32_0 = arith.constant 0 : i32
    return %arg0, %arg1, %c0_i32 : i32, i32, i32
  }
}

</mosaic_0001>

<llo_original>
// kernel: tpu_custom_call.1
$region0: #{tpu_custom_call.1}
  #allocation0 [shape = 'u32[]', space=smem, size = 0x4, offset = 0x4, fixed_abs, tag = 'smem constant byte address 0x4 - core index']
  #allocation1 [shape = 'u32[144,128]{1,0:T(1,128)}', space=vmem, size = 0x12000, scoped, tag = 'internal scratch']
  %s0 = inlined_call_operand.hbm [shape: f32[2,4,2,128], index: 0, kind: input, shape index: {}]
  %s1 = inlined_call_operand.hbm [shape: s32[2,2,128], index: 1, kind: input, shape index: {}]
  %s2 = inlined_call_operand.hbm [shape: f32[2,2,128], index: 2, kind: output, shape index: {}]
  %s3 = sld [smem:[#allocation0]]
  $region49: #{tpu_custom_call.1} parent=0
    _
  %s5 = ssub.s32 1, %s3
  %s6 = scalar_select 0, %s5, %s3
  $region1: #{tpu_custom_call.1} parent=0
    #allocation2 [shape = 'u8[8192]{0}', space=vmem, size = 0x2000, scoped, tag = 'input window, operand 0']
    #allocation3 [shape = 's32[2]{0}', space=sflag, size = 0x8, scoped, tag = 'scoped memory for tpu_custom_call.1']
    #allocation4 [shape = 's32[2]{0}', space=sflag, size = 0x8, scoped, tag = 'scoped memory for tpu_custom_call.1']
    #allocation5 [shape = 'u8[2048]{0}', space=vmem, size = 0x800, scoped, tag = 'input window, operand 1']
    #allocation6 [shape = 's32[2]{0}', space=sflag, size = 0x8, scoped, tag = 'scoped memory for tpu_custom_call.1']
    #allocation7 [shape = 'u8[2048]{0}', space=vmem, size = 0x800, scoped, tag = 'output window, operand 0']
    %7 = vsyncpa [#allocation3], 0
    %s8 = scalar_lea.sflag [#allocation3], 1
    %9 = vsyncpa %s8, 0
    %10 = vsyncpa [#allocation6], 0
    %s11 = scalar_lea.sflag [#allocation6], 1
    %12 = vsyncpa %s11, 0
    %13 = vsyncpa [#allocation4], 0
    %s14 = scalar_lea.sflag [#allocation4], 1
    %15 = vsyncpa %s14, 0
    loop: start=0, step=1, limit=4
    $region2: #{tpu_custom_call.1} parent=1 // loop_pre_header
      _
    $region3: #{tpu_custom_call.1} parent=1 // loop_header
      %s17 = sphi 0, %s21
      %p18 = scmp.ge.s32.totalorder %s17, 4
      %s24 = sphi 0, %s36
      %s25 = sphi 0, %s32
      %s26 = sphi 0, %s24
      %s27 = sphi 0, %s25
      %s28 = sphi 0, %s26
      %s29 = sphi 0, %s27
      %s41 = sphi 0, %s43
      %s44 = sphi 0, %s41
      %s45 = sphi 0, %s44
      %s61 = sphi 0, %s45
      %s69 = sphi 0, %s71
      %s72 = sphi 0, %s69
      %s73 = sphi 0, %s72
      %s89 = sphi 0, %s73
      %s97 = sphi 0, %s99
      %s100 = sphi 0, %s97
      %s101 = sphi 0, %s100
      %s117 = sphi 0, %s101
    $region4: #{tpu_custom_call.1} parent=1 // loop_header_branch
      %20 = sbr.rel (%p18) target = $region8
    $region5: #{tpu_custom_call.1} parent=1 // loop_body
      %s22 = ssub.s32 %s17, 1
      %s23 = ssub.s32 %s17, 2
      %s30 = sadd.s32 1, %s25
      %p31 = scmp.ge.s32.totalorder %s30, 1
      %s32 = scalar_select %p31, 0, %s30
      %s33 = sadd.s32 1, %s24
      %s34 = scalar_select %p31, %s33, %s24
      %p35 = scmp.ge.s32.totalorder %s34, 2
      %s36 = scalar_select %p35, 0, %s34
      %s37 = ssub.s32 %s24, %s36
      %s38 = ssub.s32 %s25, %s32
      %s39 = sor.u32 %s37, %s38
      %p40 = scmp.eq.s32.totalorder %s39, 0
      %s42 = sadd.s32 %s41, 1
      %s43 = scalar_select %p40, %s41, %s42
      %p46 = pneg %p40
      %p47 = scmp.eq.s32.totalorder %s17, 1
      %p48 = por %p46, %p47
      %p49 = scmp.ne.s32.totalorder %s41, %s44
      %p50 = scmp.eq.s32.totalorder %s17, 0
      %p51 = por %p49, %p50
      %p52 = scmp.ne.s32.totalorder %s41, %s44
      %p53 = scmp.eq.s32.totalorder %s22, 1
      %p54 = por %p52, %p53
      %p55 = scmp.ne.s32.totalorder %s44, %s45
      %p56 = scmp.eq.s32.totalorder %s22, 0
      %p57 = por %p55, %p56
      %p58 = scmp.ne.s32.totalorder %s44, %s45
      %p59 = scmp.eq.s32.totalorder %s23, 1
      %p60 = por %p58, %p59
      %p62 = scmp.ne.s32.totalorder %s45, %s61
      %p63 = scmp.eq.s32.totalorder %s23, 0
      %p64 = por %p62, %p63
      %s65 = ssub.s32 %s24, %s36
      %s66 = ssub.s32 %s25, %s32
      %s67 = sor.u32 %s65, %s66
      %p68 = scmp.eq.s32.totalorder %s67, 0
      %s70 = sadd.s32 %s69, 1
      %s71 = scalar_select %p68, %s69, %s70
      %p74 = pneg %p68
      %p75 = scmp.eq.s32.totalorder %s17, 1
      %p76 = por %p74, %p75
      %p77 = scmp.ne.s32.totalorder %s69, %s72
      %p78 = scmp.eq.s32.totalorder %s17, 0
      %p79 = por %p77, %p78
      %p80 = scmp.ne.s32.totalorder %s69, %s72
      %p81 = scmp.eq.s32.totalorder %s22, 1
      %p82 = por %p80, %p81
      %p83 = scmp.ne.s32.totalorder %s72, %s73
      %p84 = scmp.eq.s32.totalorder %s22, 0
      %p85 = por %p83, %p84
      %p86 = scmp.ne.s32.totalorder %s72, %s73
      %p87 = scmp.eq.s32.totalorder %s23, 1
      %p88 = por %p86, %p87
      %p90 = scmp.ne.s32.totalorder %s73, %s89
      %p91 = scmp.eq.s32.totalorder %s23, 0
      %p92 = por %p90, %p91
      %s93 = ssub.s32 %s24, %s36
      %s94 = ssub.s32 %s25, %s32
      %s95 = sor.u32 %s93, %s94
      %p96 = scmp.eq.s32.totalorder %s95, 0
      %s98 = sadd.s32 %s97, 1
      %s99 = scalar_select %p96, %s97, %s98
      %p102 = pneg %p96
      %p103 = scmp.eq.s32.totalorder %s17, 1
      %p104 = por %p102, %p103
      %p105 = scmp.ne.s32.totalorder %s97, %s100
      %p106 = scmp.eq.s32.totalorder %s17, 0
      %p107 = por %p105, %p106
      %p108 = scmp.ne.s32.totalorder %s97, %s100
      %p109 = scmp.eq.s32.totalorder %s22, 1
      %p110 = por %p108, %p109
      %p111 = scmp.ne.s32.totalorder %s100, %s101
      %p112 = scmp.eq.s32.totalorder %s22, 0
      %p113 = por %p111, %p112
      %p114 = scmp.ne.s32.totalorder %s100, %s101
      %p115 = scmp.eq.s32.totalorder %s23, 1
      %p116 = por %p114, %p115
      %p118 = scmp.ne.s32.totalorder %s101, %s117
      %p119 = scmp.eq.s32.totalorder %s23, 0
      %p120 = por %p118, %p119
      %p121 = scmp.le.s32.totalorder 1, %s17
      %p122 = scmp.lt.s32.totalorder %s17, 3
      %p123 = pnand %p121, %p122
      %p124 = pneg %p123
      // Predicated region
      $region9: #{tpu_custom_call.1} parent=5 // pred_check
        _
      $region10: #{tpu_custom_call.1} parent=5 // pred_check_branch
        %126 = sbr.rel (%p123) target = $region12
      $region11: #{tpu_custom_call.1} parent=5 // pred_region
        %s127 = ssub.s32 %s17, 1
      $region12: #{tpu_custom_call.1} parent=5 // pred_fallthru
        _
      %p128 = scmp.lt.s32.totalorder %s17, 2
      // Predicated region
      $region13: #{tpu_custom_call.1} parent=5 // pred_check
        %p129 = pneg %p128
      $region14: #{tpu_custom_call.1} parent=5 // pred_check_branch
        %131 = sbr.rel (%p129) target = $region16
      $region15: #{tpu_custom_call.1} parent=5 // pred_region
        // Predicated region
        $region17: #{tpu_custom_call.1} parent=15 // pred_check
          %p132 = pneg %p51
        $region18: #{tpu_custom_call.1} parent=15 // pred_check_branch
          %134 = sbr.rel (%p132) target = $region20
        $region19: #{tpu_custom_call.1} parent=15 // pred_region
          %s135 = sand.u32 %s41, 1
          %s136 = scalar_lea.sflag [#allocation3], %s135
          %s137 = sand.u32 %s41, 1
          %s138 = smul.addr %s137, 8
          %s139 = scalar_lea.vmem [#allocation2], %s138
          %s141 = ssub.s32 128, 128
          %142 = vsyncadd %s136, %s141
          %s143 = smul.addr %s24, 4
          %s144 = sadd.s32 %s25, %s143
          %s145 = smul.addr %s144, 32
          %s146 = scalar_lea.hbm %s0, %s145
          %s147 = sshll.u32 %s139, 4
          %s148 = int_to_ptr.vmem [resolvable:$true] %s147
          %153 = dma.hbm_to_vmem [thread:$0]  %s146, 128, %s148, %s136, 32, 32, 2
        $region20: #{tpu_custom_call.1} parent=15 // pred_fallthru
          _
        // Predicated region
        $region21: #{tpu_custom_call.1} parent=15 // pred_check
          %p154 = pneg %p79
        $region22: #{tpu_custom_call.1} parent=15 // pred_check_branch
          %156 = sbr.rel (%p154) target = $region24
        $region23: #{tpu_custom_call.1} parent=15 // pred_region
          %s157 = sand.u32 %s69, 1
          %s158 = scalar_lea.sflag [#allocation6], %s157
          %s159 = sand.u32 %s69, 1
          %s160 = smul.addr %s159, 2
          %s161 = scalar_lea.vmem [#allocation5], %s160
          %s163 = ssub.s32 32, 32
          %164 = vsyncadd %s158, %s163
          %s165 = sadd.s32 %s25, %s24
          %s166 = smul.addr %s165, 32
          %s167 = scalar_lea.hbm %s1, %s166
          %s169 = sshll.u32 %s161, 4
          %s170 = int_to_ptr.vmem [resolvable:$true] %s169
          %172 = dma.hbm_to_vmem [thread:$0]  %s167, 32, %s170, %s158
        $region24: #{tpu_custom_call.1} parent=15 // pred_fallthru
          _
      $region16: #{tpu_custom_call.1} parent=5 // pred_fallthru
        _
      %p173 = scmp.le.s32.totalorder 1, %s17
      %p174 = scmp.lt.s32.totalorder %s17, 3
      %p175 = pnand %p173, %p174
      %p176 = pneg %p175
      // Predicated region
      $region25: #{tpu_custom_call.1} parent=5 // pred_check
        _
      $region26: #{tpu_custom_call.1} parent=5 // pred_check_branch
        %178 = sbr.rel (%p175) target = $region28
      $region27: #{tpu_custom_call.1} parent=5 // pred_region
        %s179 = ssub.s32 %s17, 1
        %s180 = sand.u32 %s44, 1
        %s181 = scalar_lea.sflag [#allocation3], %s180
        %s182 = sand.u32 %s44, 1
        %s183 = smul.addr %s182, 8
        %s184 = scalar_lea.vmem [#allocation2], %s183
        // Predicated region
        $region29: #{tpu_custom_call.1} parent=27 // pred_check
          %p185 = pneg %p57
        $region30: #{tpu_custom_call.1} parent=27 // pred_check_branch
          %187 = sbr.rel (%p185) target = $region32
        $region31: #{tpu_custom_call.1} parent=27 // pred_region
          %188 = dma.done %s181, 128
        $region32: #{tpu_custom_call.1} parent=27 // pred_fallthru
          _
        %s189 = sand.u32 %s72, 1
        %s190 = scalar_lea.sflag [#allocation6], %s189
        %s191 = sand.u32 %s72, 1
        %s192 = smul.addr %s191, 2
        %s193 = scalar_lea.vmem [#allocation5], %s192
        // Predicated region
        $region33: #{tpu_custom_call.1} parent=27 // pred_check
          %p194 = pneg %p85
        $region34: #{tpu_custom_call.1} parent=27 // pred_check_branch
          %196 = sbr.rel (%p194) target = $region36
        $region35: #{tpu_custom_call.1} parent=27 // pred_region
          %197 = dma.done %s190, 32
        $region36: #{tpu_custom_call.1} parent=27 // pred_fallthru
          _
        %s198 = sand.u32 %s44, 1
        %s199 = scalar_lea.sflag [#allocation3], %s198
        %s200 = sand.u32 %s44, 1
        %s201 = smul.addr %s200, 8
        %s202 = scalar_lea.vmem [#allocation2], %s201
        %p203 = pneg %p57
        %p204 = pneg %p54
        %s205 = sand.u32 %s72, 1
        %s206 = scalar_lea.sflag [#allocation6], %s205
        %s207 = sand.u32 %s72, 1
        %s208 = smul.addr %s207, 2
        %s209 = scalar_lea.vmem [#allocation5], %s208
        %p210 = pneg %p85
        %p211 = pneg %p82
        %p212 = pneg %p113
        %p213 = pneg %p110
        %s214 = sand.u32 %s100, 1
        %s215 = scalar_lea.sflag [#allocation4], %s214
        %s216 = sand.u32 %s100, 1
        %s217 = smul.addr %s216, 2
        %s218 = scalar_lea.vmem [#allocation7], %s217
        %v219 = vld [vmem:[%s193] sm:$0x3]
        %v220 = vld [vmem:[%s184] sm:$0x3]
        %s221 = scalar_lea.vmem %s184, 2 [#allocation2]
        %v222 = vld [vmem:[%s221] sm:$0x3]
        %v223 = vmax.f32 %v220, %v222
        %s224 = scalar_lea.vmem %s184, 4 [#allocation2]
        %v225 = vld [vmem:[%s224] sm:$0x3]
        %v226 = vmax.f32 %v223, %v225
        %s227 = scalar_lea.vmem %s184, 6 [#allocation2]
        %v228 = vld [vmem:[%s227] sm:$0x3]
        %v229 = vmax.f32 %v226, %v228
        %v230 = vsub.f32 %v220, %v229
        %v231 = vmul.f32 %v230, 1.442695
        %v232 = vpow.pop %v231
        %v233 = vadd.f32 %v232, 0.0
        %vm234 = vcmp.eq.s32.totalorder %v219, 0
        %v235 = vsel %vm234, %v232, 0.0
        %v236 = vadd.f32 %v235, 0.0
        %v237 = vsub.f32 %v222, %v229
        %v238 = vmul.f32 %v237, 1.442695
        %v239 = vpow.pop %v238
        %v240 = vadd.f32 %v233, %v239
        %vm241 = vcmp.eq.s32.totalorder %v219, 1
        %v242 = vsel %vm241, %v239, 0.0
        %v243 = vadd.f32 %v236, %v242
        %v244 = vsub.f32 %v225, %v229
        %v245 = vmul.f32 %v244, 1.442695
        %v246 = vpow.pop %v245
        %v247 = vadd.f32 %v240, %v246
        %vm248 = vcmp.eq.s32.totalorder %v219, 2
        %v249 = vsel %vm248, %v246, 0.0
        %v250 = vadd.f32 %v243, %v249
        %v251 = vsub.f32 %v228, %v229
        %v252 = vmul.f32 %v251, 1.442695
        %v253 = vpow.pop %v252
        %v254 = vadd.f32 %v247, %v253
        %vm255 = vcmp.eq.s32.totalorder %v219, 3
        %v256 = vsel %vm255, %v253, 0.0
        %v257 = vadd.f32 %v250, %v256
        %v258 = vrcp.pop %v254
        %v259 = vmul.f32 %v257, %v258
        %v260 = vadd.f32 %v259, 1e-08
        %v261 = vsub.f32 1.0, %v260
        %v262 = vmul.f32 %v261, %v261
        %v263 = vmul.f32 %v262, -0.5
        %v264 = vlog2.pop %v260
        %v265 = vmul.f32 %v264, 0.6931472
        %v266 = vmul.f32 %v263, %v265
        %267 = vst [vmem:[%s218] sm:$0x3] %v266
        %s268 = sand.u32 %s100, 1
        %s269 = scalar_lea.sflag [#allocation4], %s268
        %s270 = sand.u32 %s100, 1
        %s271 = smul.addr %s270, 2
        %s272 = scalar_lea.vmem [#allocation7], %s271
        // Predicated region
        $region37: #{tpu_custom_call.1} parent=27 // pred_check
          %p273 = pneg %p110
        $region38: #{tpu_custom_call.1} parent=27 // pred_check_branch
          %275 = sbr.rel (%p273) target = $region40
        $region39: #{tpu_custom_call.1} parent=27 // pred_region
          %s277 = ssub.s32 32, 32
          %278 = vsyncadd %s269, %s277
          %s279 = sadd.s32 %s27, %s26
          %s280 = smul.addr %s279, 32
          %s281 = scalar_lea.hbm %s2, %s280
          %s283 = sshll.u32 %s272, 4
          %s284 = int_to_ptr.vmem [resolvable:$true] %s283
          %286 = dma.vmem_to_hbm [thread:$0]  %s284, 32, %s281, %s269
        $region40: #{tpu_custom_call.1} parent=27 // pred_fallthru
          _
      $region28: #{tpu_custom_call.1} parent=5 // pred_fallthru
        _
      %p287 = scmp.le.s32.totalorder 2, %s17
      // Predicated region
      $region41: #{tpu_custom_call.1} parent=5 // pred_check
        %p288 = pneg %p287
      $region42: #{tpu_custom_call.1} parent=5 // pred_check_branch
        %290 = sbr.rel (%p288) target = $region44
      $region43: #{tpu_custom_call.1} parent=5 // pred_region
        %s291 = ssub.s32 %s17, 2
        // Predicated region
        $region45: #{tpu_custom_call.1} parent=43 // pred_check
          %p292 = pneg %p116
        $region46: #{tpu_custom_call.1} parent=43 // pred_check_branch
          %294 = sbr.rel (%p292) target = $region48
        $region47: #{tpu_custom_call.1} parent=43 // pred_region
          %s295 = sand.u32 %s101, 1
          %s296 = scalar_lea.sflag [#allocation4], %s295
          %s297 = sand.u32 %s101, 1
          %s298 = smul.addr %s297, 2
          %s299 = scalar_lea.vmem [#allocation7], %s298
          %300 = dma.done %s296, 32
        $region48: #{tpu_custom_call.1} parent=43 // pred_fallthru
          _
      $region44: #{tpu_custom_call.1} parent=5 // pred_fallthru
        _
    $region6: #{tpu_custom_call.1} parent=1 // loop_footer
      %s21 = sadd.s32 1, %s17
    $region7: #{tpu_custom_call.1} parent=1 // loop_footer_branch
      %16 = sbr.rel target = $region3
    $region8: #{tpu_custom_call.1} parent=1 // loop_exit
      _
    %301 = vsyncpa [#allocation3], 1
    %s302 = scalar_lea.sflag [#allocation3], 1
    %303 = vsyncpa %s302, 1
    %304 = vsyncpa [#allocation6], 1
    %s305 = scalar_lea.sflag [#allocation6], 1
    %306 = vsyncpa %s305, 1
    %307 = vsyncpa [#allocation4], 1
    %s308 = scalar_lea.sflag [#allocation4], 1
    %309 = vsyncpa %s308, 1

</llo_original>
